<compile_context>
chip_gen: v5e
topology: v5e:2x2
jax: 0.10.0
libtpu: 0.0.40
codegen_flags: <defaults>
</compile_context>

<pallas_src>
import functools

import jax
import jax.numpy as jnp
from jax.experimental import pallas as pl
from jax.experimental.pallas import tpu as pltpu


def _mhsa_kernel(q_ref, k_ref, v_ref,
                 wq_ref, wk_ref, wv_ref, wo_ref, bo_ref,
                 out_ref, *, num_heads: int, head_dim: int, batch_block: int):
    """One grid step == one block of `batch_block` batch elements.

    q_ref/k_ref/v_ref : (NB, H, L, D) VMEM tiles (heads already split)
    wq/wk/wv          : (D, D)  per-head projection weights (W.T; softmax scale
                                folded into wq in the wrapper)
    wo                : (H, D, E) fc_out weight (W.T reshaped per head)
    bo                : (1, E)  fc_out bias
    out_ref           : (NB, L, E)
    """
    H, D, NB = num_heads, head_dim, batch_block
    L = q_ref.shape[2]
    E = out_ref.shape[2]
    G = NB * H
    mm_dtype = q_ref.dtype  # keep MXU operands in the input dtype (bf16 fast path)

    def proj(x_ref, w_ref):
        # Single matmul over all (batch, head) pairs: (G*L, D) @ (D, D),
        # f32 accumulation.  Leading-dim reshapes only (layout-free).
        x = x_ref[...].reshape(G * L, D)
        y = jnp.dot(x, w_ref[...], preferred_element_type=jnp.float32)
        return y.reshape(G, L, D).astype(mm_dtype)

    qp = proj(q_ref, wq_ref)   # scale 1/sqrt(E) already folded into wq
    kp = proj(k_ref, wk_ref)
    vp = proj(v_ref, wv_ref)

    # energy[g, q, k]: one batched contraction over all (batch, head) pairs.
    energy = jnp.einsum('gqd,gkd->gqk', qp, kp,
                        preferred_element_type=jnp.float32)   # (G, L, L) f32
    # TODO(synk): mask path (energy.masked_fill(mask == 0, -1e20)) not implemented.

    # Softmax over the key axis, math in f32, approx reciprocal on the EUP.
    energy = energy - jnp.max(energy, axis=-1, keepdims=True)
    p = jnp.exp(energy)
    p = p * pl.reciprocal(jnp.sum(p, axis=-1, keepdims=True), approx=True)

    # ctx[g, q, d] = sum_k p[g, q, k] * vp[g, k, d]
    ctx = jnp.einsum('gqk,gkd->gqd', p.astype(mm_dtype), vp,
                     preferred_element_type=jnp.float32)      # (G, L, D) f32

    # fc_out: "concat heads" expressed as per-head matmul + head-sum.
    # Broadcast the (H, D, E) weight along the NB axis in VMEM (leading dims
    # only, no extra HBM traffic) so the contraction stays a plain batched dot.
    wo_g = jnp.broadcast_to(wo_ref[...][None], (NB, H, D, E)).reshape(G, D, E)
    contrib = jnp.einsum('gqd,gde->gqe', ctx, wo_g,
                         preferred_element_type=jnp.float32)  # (G, L, E)
    out = contrib.reshape(NB, H, L, E).sum(axis=1) + bo_ref[...]   # (NB, L, E)
    out_ref[...] = out.astype(out_ref.dtype)


def _pick_batch_block(N, H, L, D, E, itemsize,
                      budget_bytes=8 * 1024 * 1024, cap=8):
    """Largest divisor of N (<= cap) whose rough VMEM footprint fits budget."""
    per_b = (
        3 * H * L * D * itemsize * 2        # q/k/v input tiles (double buffered)
        + 3 * H * L * D * (4 + itemsize)    # projected q/k/v (f32 acc + cast)
        + 2 * H * L * L * 4                 # energy + softmax probs
        + H * L * D * 4                     # context
        + H * L * E * 4                     # per-head fc_out contribution
        + H * D * E * 4                     # broadcast fc_out weight slice
        + 2 * L * E * itemsize              # output tile (double buffered)
    )
    per_b = max(per_b, 1)
    for cand in range(min(N, cap), 0, -1):
        if N % cand == 0 and cand * per_b <= budget_bytes:
            return cand
    return 1


def multi_head_self_attention(values, keys, query, params, num_heads: int):
    """values/keys/query: (N, L, E).  params: dict of torch-layout weights."""
    N, L, E = query.shape
    assert E % num_heads == 0
    H = num_heads
    D = E // H

    # nn.Linear computes x @ W.T + b; pre-transpose the weights so the kernel
    # does plain matmuls.  Fold the 1/sqrt(E) softmax scale into wq.
    scale = 1.0 / (float(E) ** 0.5)
    wq_t = params["queries_w"].T * scale       # (D, D)
    wk_t = params["keys_w"].T                  # (D, D)
    wv_t = params["values_w"].T                # (D, D)
    wo_r = params["fc_out_w"].T.reshape(H, D, E)   # per-head slices of fc_out.T
    bo = params["fc_out_b"].reshape(1, E)

    # Layout plumbing in the wrapper (XLA): split heads so every in-kernel
    # dot_general has a single leading batch dim.
    def split_heads(x):
        return x.reshape(N, L, H, D).transpose(0, 2, 1, 3)   # (N, H, L, D)

    q_h = split_heads(query)
    k_h = split_heads(keys)
    v_h = split_heads(values)

    NB = _pick_batch_block(N, H, L, D, E, jnp.dtype(query.dtype).itemsize)

    kernel = functools.partial(_mhsa_kernel, num_heads=H, head_dim=D,
                               batch_block=NB)

    seq_spec = pl.BlockSpec((NB, H, L, D), lambda n: (n, 0, 0, 0))
    dd_spec = pl.BlockSpec((D, D), lambda n: (0, 0))
    wo_spec = pl.BlockSpec((H, D, E), lambda n: (0, 0, 0))
    b_spec = pl.BlockSpec((1, E), lambda n: (0, 0))
    out_spec = pl.BlockSpec((NB, L, E), lambda n: (n, 0, 0))

    return pl.pallas_call(
        kernel,
        out_shape=jax.ShapeDtypeStruct((N, L, E), query.dtype),
        grid_spec=pltpu.PrefetchScalarGridSpec(
            num_scalar_prefetch=0,
            grid=(N // NB,),   # one NB-sized batch block per step
            in_specs=[seq_spec, seq_spec, seq_spec,
                      dd_spec, dd_spec, dd_spec, wo_spec, b_spec],
            out_specs=out_spec,
        ),
        compiler_params=pltpu.CompilerParams(
            dimension_semantics=("parallel",)),
    )(q_h, k_h, v_h, wq_t, wk_t, wv_t, wo_r, bo)


def _reference(values, keys, query, params, num_heads: int):
    """Pure-JAX reference mirroring the PyTorch forward (mask=None)."""
    N, L, E = query.shape
    D = E // num_heads
    v = values.reshape(N, L, num_heads, D) @ params["values_w"].T
    k = keys.reshape(N, L, num_heads, D) @ params["keys_w"].T
    q = query.reshape(N, L, num_heads, D) @ params["queries_w"].T
    energy = jnp.einsum("nqhd,nkhd->nhqk", q, k)
    attn = jax.nn.softmax(energy / jnp.sqrt(jnp.float32(E)), axis=3)
    out = jnp.einsum("nhql,nlhd->nqhd", attn, v).reshape(N, L, E)
    return out @ params["fc_out_w"].T + params["fc_out_b"]


if __name__ == "__main__":
    N, L, E, H = 2, 8, 32, 4
    D = E // H

    key = jax.random.PRNGKey(0)
    ks = jax.random.split(key, 8)
    values = jax.random.normal(ks[0], (N, L, E), jnp.float32)
    keys_in = jax.random.normal(ks[1], (N, L, E), jnp.float32)
    query = jax.random.normal(ks[2], (N, L, E), jnp.float32)

    params = {
        "values_w": jax.random.normal(ks[3], (D, D), jnp.float32) * 0.1,
        "keys_w": jax.random.normal(ks[4], (D, D), jnp.float32) * 0.1,
        "queries_w": jax.random.normal(ks[5], (D, D), jnp.float32) * 0.1,
        "fc_out_w": jax.random.normal(ks[6], (E, E), jnp.float32) * 0.1,
        "fc_out_b": jax.random.normal(ks[7], (E,), jnp.float32) * 0.1,
    }

    out = multi_head_self_attention(values, keys_in, query, params, num_heads=H)
    out = jax.block_until_ready(out)

    ref = _reference(values, keys_in, query, params, num_heads=H)
    assert out.shape == (N, L, E)
    # approx=True reciprocal in the softmax -> slightly relaxed tolerance.
    assert jnp.allclose(out, ref, atol=2e-3, rtol=2e-3), "mismatch vs reference"

    print("KERNEL_OK")
</pallas_src>

<mosaic_0001>
module attributes {stable_mosaic.version = 11 : i64} {
  func.func @_mhsa_kernel(%arg0: i32, %arg1: memref<2x4x8x8xf32, #tpu.memory_space<vmem>>, %arg2: memref<2x4x8x8xf32, #tpu.memory_space<vmem>>, %arg3: memref<2x4x8x8xf32, #tpu.memory_space<vmem>>, %arg4: memref<8x8xf32, #tpu.memory_space<vmem>>, %arg5: memref<8x8xf32, #tpu.memory_space<vmem>>, %arg6: memref<8x8xf32, #tpu.memory_space<vmem>>, %arg7: memref<4x8x32xf32, #tpu.memory_space<vmem>>, %arg8: memref<1x32xf32, #tpu.memory_space<vmem>>, %arg9: memref<2x8x32xf32, #tpu.memory_space<vmem>>) attributes {dimension_semantics = [#tpu.dimension_semantics<parallel>], iteration_bounds = array<i64: 1>, scalar_prefetch = 0 : i64, scratch_operands = 0 : i64, tpu.core_type = #tpu.core_type<tc>, window_params = [{transform_indices = @transform_0, window_bounds = array<i64: 2, 4, 8, 8>}, {transform_indices = @transform_1, window_bounds = array<i64: 2, 4, 8, 8>}, {transform_indices = @transform_2, window_bounds = array<i64: 2, 4, 8, 8>}, {pipeline_mode = #tpu.pipeline_mode<synchronous>, transform_indices = @transform_3, window_bounds = array<i64: 8, 8>}, {pipeline_mode = #tpu.pipeline_mode<synchronous>, transform_indices = @transform_4, window_bounds = array<i64: 8, 8>}, {pipeline_mode = #tpu.pipeline_mode<synchronous>, transform_indices = @transform_5, window_bounds = array<i64: 8, 8>}, {pipeline_mode = #tpu.pipeline_mode<synchronous>, transform_indices = @transform_6, window_bounds = array<i64: 4, 8, 32>}, {pipeline_mode = #tpu.pipeline_mode<synchronous>, transform_indices = @transform_7, window_bounds = array<i64: 1, 32>}, {transform_indices = @transform_8, window_bounds = array<i64: 2, 8, 32>}]} {
    %c0 = arith.constant 0 : index
    %c0_0 = arith.constant 0 : index
    %c0_1 = arith.constant 0 : index
    %c0_2 = arith.constant 0 : index
    %0 = vector.load %arg1[%c0, %c0_0, %c0_1, %c0_2] : memref<2x4x8x8xf32, #tpu.memory_space<vmem>>, vector<2x4x8x8xf32>
    %1 = vector.shape_cast %0 : vector<2x4x8x8xf32> to vector<64x8xf32>
    %c0_3 = arith.constant 0 : index
    %c0_4 = arith.constant 0 : index
    %2 = vector.load %arg4[%c0_3, %c0_4] : memref<8x8xf32, #tpu.memory_space<vmem>>, vector<8x8xf32>
    %cst = arith.constant dense<0.000000e+00> : vector<64x8xf32>
    %3 = tpu.matmul %1, %2, %cst {dimension_numbers = #tpu.dot_dimension_numbers<[1], [0], [0], [1], [0, 0, 1, 1], [], []>} : vector<64x8xf32>, vector<8x8xf32>, vector<64x8xf32> -> vector<64x8xf32>
    %4 = vector.shape_cast %3 : vector<64x8xf32> to vector<8x8x8xf32>
    %c0_5 = arith.constant 0 : index
    %c0_6 = arith.constant 0 : index
    %c0_7 = arith.constant 0 : index
    %c0_8 = arith.constant 0 : index
    %5 = vector.load %arg2[%c0_5, %c0_6, %c0_7, %c0_8] : memref<2x4x8x8xf32, #tpu.memory_space<vmem>>, vector<2x4x8x8xf32>
    %6 = vector.shape_cast %5 : vector<2x4x8x8xf32> to vector<64x8xf32>
    %c0_9 = arith.constant 0 : index
    %c0_10 = arith.constant 0 : index
    %7 = vector.load %arg5[%c0_9, %c0_10] : memref<8x8xf32, #tpu.memory_space<vmem>>, vector<8x8xf32>
    %cst_11 = arith.constant dense<0.000000e+00> : vector<64x8xf32>
    %8 = tpu.matmul %6, %7, %cst_11 {dimension_numbers = #tpu.dot_dimension_numbers<[1], [0], [0], [1], [0, 0, 1, 1], [], []>} : vector<64x8xf32>, vector<8x8xf32>, vector<64x8xf32> -> vector<64x8xf32>
    %9 = vector.shape_cast %8 : vector<64x8xf32> to vector<8x8x8xf32>
    %c0_12 = arith.constant 0 : index
    %c0_13 = arith.constant 0 : index
    %c0_14 = arith.constant 0 : index
    %c0_15 = arith.constant 0 : index
    %10 = vector.load %arg3[%c0_12, %c0_13, %c0_14, %c0_15] : memref<2x4x8x8xf32, #tpu.memory_space<vmem>>, vector<2x4x8x8xf32>
    %11 = vector.shape_cast %10 : vector<2x4x8x8xf32> to vector<64x8xf32>
    %c0_16 = arith.constant 0 : index
    %c0_17 = arith.constant 0 : index
    %12 = vector.load %arg6[%c0_16, %c0_17] : memref<8x8xf32, #tpu.memory_space<vmem>>, vector<8x8xf32>
    %cst_18 = arith.constant dense<0.000000e+00> : vector<64x8xf32>
    %13 = tpu.matmul %11, %12, %cst_18 {dimension_numbers = #tpu.dot_dimension_numbers<[1], [0], [0], [1], [0, 0, 1, 1], [], []>} : vector<64x8xf32>, vector<8x8xf32>, vector<64x8xf32> -> vector<64x8xf32>
    %14 = vector.shape_cast %13 : vector<64x8xf32> to vector<8x8x8xf32>
    "tpu.trace_start"() <{level = 10 : i32, message = "gqd,gkd->gqk"}> : () -> ()
    %cst_19 = arith.constant dense<0.000000e+00> : vector<8x8x8xf32>
    %15 = tpu.matmul %4, %9, %cst_19 {dimension_numbers = #tpu.dot_dimension_numbers<[2], [2], [1], [1], [0, 0, 0, 1, 1, 1], [0], [0]>} : vector<8x8x8xf32>, vector<8x8x8xf32>, vector<8x8x8xf32> -> vector<8x8x8xf32>
    "tpu.trace_stop"() : () -> ()
    %cst_20 = arith.constant dense<0xFF800000> : vector<8x8xf32>
    %16 = vector.multi_reduction <maximumf>, %15, %cst_20 [2] : vector<8x8x8xf32> to vector<8x8xf32>
    %17 = vector.shape_cast %16 : vector<8x8xf32> to vector<8x8x1xf32>
    %18 = vector.broadcast %17 : vector<8x8x1xf32> to vector<8x8x8xf32>
    %19 = arith.subf %15, %18 : vector<8x8x8xf32>
    %20 = math.exp %19 : vector<8x8x8xf32>
    %cst_21 = arith.constant dense<0.000000e+00> : vector<8x8xf32>
    %21 = vector.multi_reduction <add>, %20, %cst_21 [2] : vector<8x8x8xf32> to vector<8x8xf32>
    %22 = vector.shape_cast %21 : vector<8x8xf32> to vector<8x8x1xf32>
    %23 = tpu.reciprocal %22 {approx = true} : vector<8x8x1xf32> -> vector<8x8x1xf32>
    %24 = vector.broadcast %23 : vector<8x8x1xf32> to vector<8x8x8xf32>
    %25 = arith.mulf %20, %24 : vector<8x8x8xf32>
    "tpu.trace_start"() <{level = 10 : i32, message = "gqk,gkd->gqd"}> : () -> ()
    %cst_22 = arith.constant dense<0.000000e+00> : vector<8x8x8xf32>
    %26 = tpu.matmul %25, %14, %cst_22 {dimension_numbers = #tpu.dot_dimension_numbers<[2], [1], [1], [2], [0, 0, 0, 1, 1, 2], [0], [0]>} : vector<8x8x8xf32>, vector<8x8x8xf32>, vector<8x8x8xf32> -> vector<8x8x8xf32>
    "tpu.trace_stop"() : () -> ()
    %c0_23 = arith.constant 0 : index
    %c0_24 = arith.constant 0 : index
    %c0_25 = arith.constant 0 : index
    %27 = vector.load %arg7[%c0_23, %c0_24, %c0_25] : memref<4x8x32xf32, #tpu.memory_space<vmem>>, vector<4x8x32xf32>
    %28 = vector.shape_cast %27 : vector<4x8x32xf32> to vector<1x4x8x32xf32>
    %29 = vector.shape_cast %28 : vector<1x4x8x32xf32> to vector<1x4x8x32xf32>
    %30 = vector.broadcast %29 : vector<1x4x8x32xf32> to vector<2x4x8x32xf32>
    %31 = vector.shape_cast %30 : vector<2x4x8x32xf32> to vector<8x8x32xf32>
    "tpu.trace_start"() <{level = 10 : i32, message = "gqd,gde->gqe"}> : () -> ()
    %cst_26 = arith.constant dense<0.000000e+00> : vector<8x8x32xf32>
    %32 = tpu.matmul %26, %31, %cst_26 {dimension_numbers = #tpu.dot_dimension_numbers<[2], [1], [1], [2], [0, 0, 0, 1, 1, 2], [0], [0]>} : vector<8x8x8xf32>, vector<8x8x32xf32>, vector<8x8x32xf32> -> vector<8x8x32xf32>
    "tpu.trace_stop"() : () -> ()
    %33 = vector.shape_cast %32 : vector<8x8x32xf32> to vector<2x4x8x32xf32>
    %cst_27 = arith.constant dense<0.000000e+00> : vector<2x8x32xf32>
    %34 = vector.multi_reduction <add>, %33, %cst_27 [1] : vector<2x4x8x32xf32> to vector<2x8x32xf32>
    %c0_28 = arith.constant 0 : index
    %c0_29 = arith.constant 0 : index
    %35 = vector.load %arg8[%c0_28, %c0_29] : memref<1x32xf32, #tpu.memory_space<vmem>>, vector<1x32xf32>
    %36 = vector.shape_cast %35 : vector<1x32xf32> to vector<1x1x32xf32>
    %37 = vector.broadcast %36 : vector<1x1x32xf32> to vector<2x8x32xf32>
    %38 = arith.addf %34, %37 : vector<2x8x32xf32>
    %c0_30 = arith.constant 0 : index
    %c0_31 = arith.constant 0 : index
    %c0_32 = arith.constant 0 : index
    %39 = vector.load %arg9[%c0_30, %c0_31, %c0_32] : memref<2x8x32xf32, #tpu.memory_space<vmem>>, vector<2x8x32xf32>
    tpu.vector_store %arg9[%c0_30, %c0_31, %c0_32], %38 {strides = array<i32>} : memref<2x8x32xf32, #tpu.memory_space<vmem>>, vector<2x8x32xf32>,
    return
  }
  func.func @transform_0(%arg0: i32) -> (i32, i32, i32, i32) {
    %c0_i32 = arith.constant 0 : i32
    %c0_i32_0 = arith.constant 0 : i32
    %c0_i32_1 = arith.constant 0 : i32
    %c0_i32_2 = arith.constant 0 : i32
    return %arg0, %c0_i32, %c0_i32_0, %c0_i32_1 : i32, i32, i32, i32
  }
  func.func @transform_1(%arg0: i32) -> (i32, i32, i32, i32) {
    %c0_i32 = arith.constant 0 : i32
    %c0_i32_0 = arith.constant 0 : i32
    %c0_i32_1 = arith.constant 0 : i32
    %c0_i32_2 = arith.constant 0 : i32
    return %arg0, %c0_i32, %c0_i32_0, %c0_i32_1 : i32, i32, i32, i32
  }
  func.func @transform_2(%arg0: i32) -> (i32, i32, i32, i32) {
    %c0_i32 = arith.constant 0 : i32
    %c0_i32_0 = arith.constant 0 : i32
    %c0_i32_1 = arith.constant 0 : i32
    %c0_i32_2 = arith.constant 0 : i32
    return %arg0, %c0_i32, %c0_i32_0, %c0_i32_1 : i32, i32, i32, i32
  }
  func.func @transform_3(%arg0: i32) -> (i32, i32) {
    %c0_i32 = arith.constant 0 : i32
    %c0_i32_0 = arith.constant 0 : i32
    %c0_i32_1 = arith.constant 0 : i32
    return %c0_i32, %c0_i32_0 : i32, i32
  }
  func.func @transform_4(%arg0: i32) -> (i32, i32) {
    %c0_i32 = arith.constant 0 : i32
    %c0_i32_0 = arith.constant 0 : i32
    %c0_i32_1 = arith.constant 0 : i32
    return %c0_i32, %c0_i32_0 : i32, i32
  }
  func.func @transform_5(%arg0: i32) -> (i32, i32) {
    %c0_i32 = arith.constant 0 : i32
    %c0_i32_0 = arith.constant 0 : i32
    %c0_i32_1 = arith.constant 0 : i32
    return %c0_i32, %c0_i32_0 : i32, i32
  }
  func.func @transform_6(%arg0: i32) -> (i32, i32, i32) {
    %c0_i32 = arith.constant 0 : i32
    %c0_i32_0 = arith.constant 0 : i32
    %c0_i32_1 = arith.constant 0 : i32
    %c0_i32_2 = arith.constant 0 : i32
    return %c0_i32, %c0_i32_0, %c0_i32_1 : i32, i32, i32
  }
  func.func @transform_7(%arg0: i32) -> (i32, i32) {
    %c0_i32 = arith.constant 0 : i32
    %c0_i32_0 = arith.constant 0 : i32
    %c0_i32_1 = arith.constant 0 : i32
    return %c0_i32, %c0_i32_0 : i32, i32
  }
  func.func @transform_8(%arg0: i32) -> (i32, i32, i32) {
    %c0_i32 = arith.constant 0 : i32
    %c0_i32_0 = arith.constant 0 : i32
    %c0_i32_1 = arith.constant 0 : i32
    return %arg0, %c0_i32, %c0_i32_0 : i32, i32, i32
  }
}

</mosaic_0001>

<llo_original>
// kernel: tpu_custom_call.1
$region0: #{tpu_custom_call.1}
  #allocation0 [shape = 'u32[]', space=smem, size = 0x4, offset = 0x4, fixed_abs, tag = 'smem constant byte address 0x4 - core index']
  #allocation1 [shape = 'u32[72,128]{1,0:T(1,128)}', space=vmem, size = 0x9000, scoped, tag = 'internal scratch']
  %s0 = inlined_call_operand.hbm [shape: f32[2,4,8,8], index: 0, kind: input, shape index: {}]
  %s1 = inlined_call_operand.hbm [shape: f32[2,4,8,8], index: 1, kind: input, shape index: {}]
  %s2 = inlined_call_operand.hbm [shape: f32[2,4,8,8], index: 2, kind: input, shape index: {}]
  %s3 = inlined_call_operand.hbm [shape: f32[8,8], index: 3, kind: input, shape index: {}]
  %s4 = inlined_call_operand.hbm [shape: f32[8,8], index: 4, kind: input, shape index: {}]
  %s5 = inlined_call_operand.hbm [shape: f32[8,8], index: 5, kind: input, shape index: {}]
  %s6 = inlined_call_operand.hbm [shape: f32[4,8,32], index: 6, kind: input, shape index: {}]
  %s7 = inlined_call_operand.vmem [shape: f32[1,32], index: 7, kind: input, shape index: {}]
  %s8 = inlined_call_operand.hbm [shape: f32[2,8,32], index: 8, kind: output, shape index: {}]
  %s9 = sld [smem:[#allocation0]]
  $region70: #{tpu_custom_call.1} parent=0
    _
  %s11 = ssub.s32 1, %s9
  %s12 = scalar_select 0, %s11, %s9
  $region1: #{tpu_custom_call.1} parent=0
    #allocation2 [shape = 'u8[32768]{0}', space=vmem, size = 0x8000, scoped, tag = 'input window, operand 0, single buffered']
    #allocation3 [shape = 's32[1]{0}', space=sflag, size = 0x4, scoped, tag = 'scoped memory for tpu_custom_call.1']
    #allocation4 [shape = 's32[1]{0}', space=sflag, size = 0x4, scoped, tag = 'scoped memory for tpu_custom_call.1']
    #allocation5 [shape = 'u8[32768]{0}', space=vmem, size = 0x8000, scoped, tag = 'input window, operand 1, single buffered']
    #allocation6 [shape = 's32[1]{0}', space=sflag, size = 0x4, scoped, tag = 'scoped memory for tpu_custom_call.1']
    #allocation7 [shape = 'u8[32768]{0}', space=vmem, size = 0x8000, scoped, tag = 'input window, operand 2, single buffered']
    #allocation8 [shape = 'u8[4096]{0}', space=vmem, size = 0x1000, scoped, tag = 'input window, operand 3, single buffered']
    #allocation9 [shape = 's32[1]{0}', space=sflag, size = 0x4, scoped, tag = 'scoped memory for tpu_custom_call.1']
    #allocation10 [shape = 'u8[4096]{0}', space=vmem, size = 0x1000, scoped, tag = 'input window, operand 4, single buffered']
    #allocation11 [shape = 'u8[4096]{0}', space=vmem, size = 0x1000, scoped, tag = 'input window, operand 5, single buffered']
    #allocation12 [shape = 's32[1]{0}', space=sflag, size = 0x4, scoped, tag = 'scoped memory for tpu_custom_call.1']
    #allocation13 [shape = 'u8[16384]{0}', space=vmem, size = 0x4000, scoped, tag = 'input window, operand 6, single buffered']
    #allocation14 [shape = 'u8[8192]{0}', space=vmem, size = 0x2000, scoped, tag = 'output window, operand 0, single buffered']
    %13 = vsyncpa [#allocation3], 0
    %14 = vsyncpa [#allocation6], 0
    %15 = vsyncpa [#allocation9], 0
    %16 = vsyncpa [#allocation12], 0
    %17 = vsyncpa [#allocation4], 0
    // Predicated region
    $region2: #{tpu_custom_call.1} parent=1 // pred_check
      _
    $region3: #{tpu_custom_call.1} parent=1 // pred_check_branch
      %19 = sbr.rel (0) target = $region5
    $region4: #{tpu_custom_call.1} parent=1 // pred_region
      %21 = vsyncadd [#allocation3], 0
      %s22 = sshll.u32 %s0, 4
      %s23 = int_to_ptr.hbm [resolvable:$true] %s22
      %s24 = sshll.u32 [#allocation2], 4
      %s25 = int_to_ptr.vmem [resolvable:$true] %s24
      %30 = dma.hbm_to_vmem [thread:$0]  %s23, 1024, %s25, [#allocation3], 128, 128, 8
    $region5: #{tpu_custom_call.1} parent=1 // pred_fallthru
      _
    // Predicated region
    $region6: #{tpu_custom_call.1} parent=1 // pred_check
      _
    $region7: #{tpu_custom_call.1} parent=1 // pred_check_branch
      %32 = sbr.rel (0) target = $region9
    $region8: #{tpu_custom_call.1} parent=1 // pred_region
      %34 = vsyncadd [#allocation6], 0
      %s35 = sshll.u32 %s1, 4
      %s36 = int_to_ptr.hbm [resolvable:$true] %s35
      %s37 = sshll.u32 [#allocation5], 4
      %s38 = int_to_ptr.vmem [resolvable:$true] %s37
      %43 = dma.hbm_to_vmem [thread:$0]  %s36, 1024, %s38, [#allocation6], 128, 128, 8
    $region9: #{tpu_custom_call.1} parent=1 // pred_fallthru
      _
    // Predicated region
    $region10: #{tpu_custom_call.1} parent=1 // pred_check
      _
    $region11: #{tpu_custom_call.1} parent=1 // pred_check_branch
      %45 = sbr.rel (0) target = $region13
    $region12: #{tpu_custom_call.1} parent=1 // pred_region
      %47 = vsyncadd [#allocation6], 0
      %s48 = sshll.u32 %s2, 4
      %s49 = int_to_ptr.hbm [resolvable:$true] %s48
      %s50 = sshll.u32 [#allocation7], 4
      %s51 = int_to_ptr.vmem [resolvable:$true] %s50
      %56 = dma.hbm_to_vmem [thread:$0]  %s49, 1024, %s51, [#allocation6], 128, 128, 8
    $region13: #{tpu_custom_call.1} parent=1 // pred_fallthru
      _
    // Predicated region
    $region14: #{tpu_custom_call.1} parent=1 // pred_check
      _
    $region15: #{tpu_custom_call.1} parent=1 // pred_check_branch
      %58 = sbr.rel (0) target = $region17
    $region16: #{tpu_custom_call.1} parent=1 // pred_region
      %60 = vsyncadd [#allocation9], 0
      %s62 = sshll.u32 %s3, 4
      %s63 = int_to_ptr.hbm [resolvable:$true] %s62
      %s64 = sshll.u32 [#allocation8], 4
      %s65 = int_to_ptr.vmem [resolvable:$true] %s64
      %67 = dma.hbm_to_vmem [thread:$0]  %s63, 128, %s65, [#allocation9]
    $region17: #{tpu_custom_call.1} parent=1 // pred_fallthru
      _
    // Predicated region
    $region18: #{tpu_custom_call.1} parent=1 // pred_check
      _
    $region19: #{tpu_custom_call.1} parent=1 // pred_check_branch
      %69 = sbr.rel (0) target = $region21
    $region20: #{tpu_custom_call.1} parent=1 // pred_region
      %71 = vsyncadd [#allocation9], 0
      %s73 = sshll.u32 %s4, 4
      %s74 = int_to_ptr.hbm [resolvable:$true] %s73
      %s75 = sshll.u32 [#allocation10], 4
      %s76 = int_to_ptr.vmem [resolvable:$true] %s75
      %78 = dma.hbm_to_vmem [thread:$0]  %s74, 128, %s76, [#allocation9]
    $region21: #{tpu_custom_call.1} parent=1 // pred_fallthru
      _
    // Predicated region
    $region22: #{tpu_custom_call.1} parent=1 // pred_check
      _
    $region23: #{tpu_custom_call.1} parent=1 // pred_check_branch
      %80 = sbr.rel (0) target = $region25
    $region24: #{tpu_custom_call.1} parent=1 // pred_region
      %82 = vsyncadd [#allocation12], 0
      %s84 = sshll.u32 %s5, 4
      %s85 = int_to_ptr.hbm [resolvable:$true] %s84
      %s86 = sshll.u32 [#allocation11], 4
      %s87 = int_to_ptr.vmem [resolvable:$true] %s86
      %89 = dma.hbm_to_vmem [thread:$0]  %s85, 128, %s87, [#allocation12]
    $region25: #{tpu_custom_call.1} parent=1 // pred_fallthru
      _
    // Predicated region
    $region26: #{tpu_custom_call.1} parent=1 // pred_check
      _
    $region27: #{tpu_custom_call.1} parent=1 // pred_check_branch
      %91 = sbr.rel (0) target = $region29
    $region28: #{tpu_custom_call.1} parent=1 // pred_region
      %93 = vsyncadd [#allocation12], 0
      %s94 = sshll.u32 %s6, 4
      %s95 = int_to_ptr.hbm [resolvable:$true] %s94
      %s96 = sshll.u32 [#allocation13], 4
      %s97 = int_to_ptr.vmem [resolvable:$true] %s96
      %102 = dma.hbm_to_vmem [thread:$0]  %s95, 512, %s97, [#allocation12], 128, 128, 8
    $region29: #{tpu_custom_call.1} parent=1 // pred_fallthru
      _
    // Predicated region
    $region30: #{tpu_custom_call.1} parent=1 // pred_check
      _
    $region31: #{tpu_custom_call.1} parent=1 // pred_check_branch
      %104 = sbr.rel (0) target = $region33
    $region32: #{tpu_custom_call.1} parent=1 // pred_region
      _
    $region33: #{tpu_custom_call.1} parent=1 // pred_fallthru
      _
    // Predicated region
    $region34: #{tpu_custom_call.1} parent=1 // pred_check
      _
    $region35: #{tpu_custom_call.1} parent=1 // pred_check_branch
      %106 = sbr.rel (0) target = $region37
    $region36: #{tpu_custom_call.1} parent=1 // pred_region
      %108 = dma.done [#allocation3], 1024
    $region37: #{tpu_custom_call.1} parent=1 // pred_fallthru
      _
    // Predicated region
    $region38: #{tpu_custom_call.1} parent=1 // pred_check
      _
    $region39: #{tpu_custom_call.1} parent=1 // pred_check_branch
      %110 = sbr.rel (0) target = $region41
    $region40: #{tpu_custom_call.1} parent=1 // pred_region
      %112 = dma.done [#allocation6], 1024
    $region41: #{tpu_custom_call.1} parent=1 // pred_fallthru
      _
    // Predicated region
    $region42: #{tpu_custom_call.1} parent=1 // pred_check
      _
    $region43: #{tpu_custom_call.1} parent=1 // pred_check_branch
      %114 = sbr.rel (0) target = $region45
    $region44: #{tpu_custom_call.1} parent=1 // pred_region
      %116 = dma.done [#allocation6], 1024
    $region45: #{tpu_custom_call.1} parent=1 // pred_fallthru
      _
    // Predicated region
    $region46: #{tpu_custom_call.1} parent=1 // pred_check
      _
    $region47: #{tpu_custom_call.1} parent=1 // pred_check_branch
      %118 = sbr.rel (0) target = $region49
    $region48: #{tpu_custom_call.1} parent=1 // pred_region
      %120 = dma.done [#allocation9], 128
    $region49: #{tpu_custom_call.1} parent=1 // pred_fallthru
      _
    // Predicated region
    $region50: #{tpu_custom_call.1} parent=1 // pred_check
      _
    $region51: #{tpu_custom_call.1} parent=1 // pred_check_branch
      %122 = sbr.rel (0) target = $region53
    $region52: #{tpu_custom_call.1} parent=1 // pred_region
      %124 = dma.done [#allocation9], 128
    $region53: #{tpu_custom_call.1} parent=1 // pred_fallthru
      _
    // Predicated region
    $region54: #{tpu_custom_call.1} parent=1 // pred_check
      _
    $region55: #{tpu_custom_call.1} parent=1 // pred_check_branch
      %126 = sbr.rel (0) target = $region57
    $region56: #{tpu_custom_call.1} parent=1 // pred_region
      %128 = dma.done [#allocation12], 128
    $region57: #{tpu_custom_call.1} parent=1 // pred_fallthru
      _
    // Predicated region
    $region58: #{tpu_custom_call.1} parent=1 // pred_check
      _
    $region59: #{tpu_custom_call.1} parent=1 // pred_check_branch
      %130 = sbr.rel (0) target = $region61
    $region60: #{tpu_custom_call.1} parent=1 // pred_region
      %132 = dma.done [#allocation12], 512
    $region61: #{tpu_custom_call.1} parent=1 // pred_fallthru
      _
    %v133 = vld [vmem:[#allocation2] sm:$0xff]
    %v134 = vld [vmem:[#allocation2 + $0x8] sm:$0xff]
    %v135 = vld [vmem:[#allocation2 + $0x10] sm:$0xff]
    %v136 = vld [vmem:[#allocation2 + $0x18] sm:$0xff]
    %v137 = vld [vmem:[#allocation2 + $0x20] sm:$0xff]
    %v138 = vld [vmem:[#allocation2 + $0x28] sm:$0xff]
    %v139 = vld [vmem:[#allocation2 + $0x30] sm:$0xff]
    %v140 = vld [vmem:[#allocation2 + $0x38] sm:$0xff]
    %v141 = vld [vmem:[#allocation8] sm:$0xff]
    %vm142 = vcmask 64512
    %v144 = vsel %vm142, %v133, 0
    %v147 = vsel %vm142, %v134, 0
    %v150 = vsel %vm142, %v135, 0
    %v153 = vsel %vm142, %v136, 0
    %v156 = vsel %vm142, %v137, 0
    %v159 = vsel %vm142, %v138, 0
    %v162 = vsel %vm142, %v139, 0
    %v165 = vsel %vm142, %v140, 0
    %167 = vmatpush.msra.mxu0 0.0
    %168 = vmatpush.msra.mxu0 0.0
    %169 = vmatpush.msra.mxu0 0.0
    %170 = vmatpush.msra.mxu0 0.0
    %171 = vmatpush.msra.mxu0 0.0
    %172 = vmatpush.msra.mxu0 0.0
    %173 = vmatpush.msra.mxu0 0.0
    %174 = vmatpush.msra.mxu0 0.0
    %175 = vmatpush.msra.mxu0 0.0
    %176 = vmatpush.msra.mxu0 0.0
    %177 = vmatpush.msra.mxu0 0.0
    %178 = vmatpush.msra.mxu0 0.0
    %179 = vmatpush.msra.mxu0 0.0
    %180 = vmatpush.msra.mxu0 0.0
    %181 = vmatpush.msra.mxu0 0.0
    %182 = vmatpush.msra.mxu0 %v141
    %183 = vmatmul.f32.gmra.mxu0 %v144
    %v184 = vpop.f32.mrf.mxu0
    %v185 = vadd.f32 0.0, %v184
    %186 = vmatmul.f32.gmra.mxu0 %v147
    %v187 = vpop.f32.mrf.mxu0
    %v188 = vadd.f32 0.0, %v187
    %189 = vmatmul.f32.gmra.mxu0 %v150
    %v190 = vpop.f32.mrf.mxu0
    %v191 = vadd.f32 0.0, %v190
    %192 = vmatmul.f32.gmra.mxu0 %v153
    %v193 = vpop.f32.mrf.mxu0
    %v194 = vadd.f32 0.0, %v193
    %195 = vmatmul.f32.gmra.mxu0 %v156
    %v196 = vpop.f32.mrf.mxu0
    %v197 = vadd.f32 0.0, %v196
    %198 = vmatmul.f32.gmra.mxu0 %v159
    %v199 = vpop.f32.mrf.mxu0
    %v200 = vadd.f32 0.0, %v199
    %201 = vmatmul.f32.gmra.mxu0 %v162
    %v202 = vpop.f32.mrf.mxu0
    %v203 = vadd.f32 0.0, %v202
    %204 = vmatmul.f32.gmra.mxu0 %v165
    %v205 = vpop.f32.mrf.mxu0
    %v206 = vadd.f32 0.0, %v205
    %207 = vdwg.mxu0
    %v208 = vld [vmem:[#allocation5] sm:$0xff]
    %v209 = vld [vmem:[#allocation5 + $0x8] sm:$0xff]
    %v210 = vld [vmem:[#allocation5 + $0x10] sm:$0xff]
    %v211 = vld [vmem:[#allocation5 + $0x18] sm:$0xff]
    %v212 = vld [vmem:[#allocation5 + $0x20] sm:$0xff]
    %v213 = vld [vmem:[#allocation5 + $0x28] sm:$0xff]
    %v214 = vld [vmem:[#allocation5 + $0x30] sm:$0xff]
    %v215 = vld [vmem:[#allocation5 + $0x38] sm:$0xff]
    %v216 = vld [vmem:[#allocation10] sm:$0xff]
    %v218 = vsel %vm142, %v208, 0
    %v221 = vsel %vm142, %v209, 0
    %v224 = vsel %vm142, %v210, 0
    %v227 = vsel %vm142, %v211, 0
    %v230 = vsel %vm142, %v212, 0
    %v233 = vsel %vm142, %v213, 0
    %v236 = vsel %vm142, %v214, 0
    %v239 = vsel %vm142, %v215, 0
    %241 = vmatpush.msra.mxu0 0.0
    %242 = vmatpush.msra.mxu0 0.0
    %243 = vmatpush.msra.mxu0 0.0
    %244 = vmatpush.msra.mxu0 0.0
    %245 = vmatpush.msra.mxu0 0.0
    %246 = vmatpush.msra.mxu0 0.0
    %247 = vmatpush.msra.mxu0 0.0
    %248 = vmatpush.msra.mxu0 0.0
    %249 = vmatpush.msra.mxu0 0.0
    %250 = vmatpush.msra.mxu0 0.0
    %251 = vmatpush.msra.mxu0 0.0
    %252 = vmatpush.msra.mxu0 0.0
    %253 = vmatpush.msra.mxu0 0.0
    %254 = vmatpush.msra.mxu0 0.0
    %255 = vmatpush.msra.mxu0 0.0
    %256 = vmatpush.msra.mxu0 %v216
    %257 = vmatmul.f32.gmra.mxu0 %v218
    %v258 = vpop.f32.mrf.mxu0
    %v259 = vadd.f32 0.0, %v258
    %260 = vmatmul.f32.gmra.mxu0 %v221
    %v261 = vpop.f32.mrf.mxu0
    %v262 = vadd.f32 0.0, %v261
    %263 = vmatmul.f32.gmra.mxu0 %v224
    %v264 = vpop.f32.mrf.mxu0
    %v265 = vadd.f32 0.0, %v264
    %266 = vmatmul.f32.gmra.mxu0 %v227
    %v267 = vpop.f32.mrf.mxu0
    %v268 = vadd.f32 0.0, %v267
    %269 = vmatmul.f32.gmra.mxu0 %v230
    %v270 = vpop.f32.mrf.mxu0
    %v271 = vadd.f32 0.0, %v270
    %272 = vmatmul.f32.gmra.mxu0 %v233
    %v273 = vpop.f32.mrf.mxu0
    %v274 = vadd.f32 0.0, %v273
    %275 = vmatmul.f32.gmra.mxu0 %v236
    %v276 = vpop.f32.mrf.mxu0
    %v277 = vadd.f32 0.0, %v276
    %278 = vmatmul.f32.gmra.mxu0 %v239
    %v279 = vpop.f32.mrf.mxu0
    %v280 = vadd.f32 0.0, %v279
    %281 = vdwg.mxu0
    %v282 = vld [vmem:[#allocation7] sm:$0xff]
    %v283 = vld [vmem:[#allocation7 + $0x8] sm:$0xff]
    %v284 = vld [vmem:[#allocation7 + $0x10] sm:$0xff]
    %v285 = vld [vmem:[#allocation7 + $0x18] sm:$0xff]
    %v286 = vld [vmem:[#allocation7 + $0x20] sm:$0xff]
    %v287 = vld [vmem:[#allocation7 + $0x28] sm:$0xff]
    %v288 = vld [vmem:[#allocation7 + $0x30] sm:$0xff]
    %v289 = vld [vmem:[#allocation7 + $0x38] sm:$0xff]
    %v290 = vld [vmem:[#allocation11] sm:$0xff]
    %v292 = vsel %vm142, %v282, 0
    %v295 = vsel %vm142, %v283, 0
    %v298 = vsel %vm142, %v284, 0
    %v301 = vsel %vm142, %v285, 0
    %v304 = vsel %vm142, %v286, 0
    %v307 = vsel %vm142, %v287, 0
    %v310 = vsel %vm142, %v288, 0
    %v313 = vsel %vm142, %v289, 0
    %315 = vmatpush.msra.mxu0 0.0
    %316 = vmatpush.msra.mxu0 0.0
    %317 = vmatpush.msra.mxu0 0.0
    %318 = vmatpush.msra.mxu0 0.0
    %319 = vmatpush.msra.mxu0 0.0
    %320 = vmatpush.msra.mxu0 0.0
    %321 = vmatpush.msra.mxu0 0.0
    %322 = vmatpush.msra.mxu0 0.0
    %323 = vmatpush.msra.mxu0 0.0
    %324 = vmatpush.msra.mxu0 0.0
    %325 = vmatpush.msra.mxu0 0.0
    %326 = vmatpush.msra.mxu0 0.0
    %327 = vmatpush.msra.mxu0 0.0
    %328 = vmatpush.msra.mxu0 0.0
    %329 = vmatpush.msra.mxu0 0.0
    %330 = vmatpush.msra.mxu0 %v290
    %331 = vmatmul.f32.gmra.mxu0 %v292
    %v332 = vpop.f32.mrf.mxu0
    %v333 = vadd.f32 0.0, %v332
    %334 = vmatmul.f32.gmra.mxu0 %v295
    %v335 = vpop.f32.mrf.mxu0
    %v336 = vadd.f32 0.0, %v335
    %337 = vmatmul.f32.gmra.mxu0 %v298
    %v338 = vpop.f32.mrf.mxu0
    %v339 = vadd.f32 0.0, %v338
    %340 = vmatmul.f32.gmra.mxu0 %v301
    %v341 = vpop.f32.mrf.mxu0
    %v342 = vadd.f32 0.0, %v341
    %343 = vmatmul.f32.gmra.mxu0 %v304
    %v344 = vpop.f32.mrf.mxu0
    %v345 = vadd.f32 0.0, %v344
    %346 = vmatmul.f32.gmra.mxu0 %v307
    %v347 = vpop.f32.mrf.mxu0
    %v348 = vadd.f32 0.0, %v347
    %349 = vmatmul.f32.gmra.mxu0 %v310
    %v350 = vpop.f32.mrf.mxu0
    %v351 = vadd.f32 0.0, %v350
    %352 = vmatmul.f32.gmra.mxu0 %v313
    %v353 = vpop.f32.mrf.mxu0
    %v354 = vadd.f32 0.0, %v353
    %355 = vdwg.mxu0
    %v357 = vsel %vm142, %v185, 0
    %v360 = vsel %vm142, %v259, 0
    %362 = vmatpush.xpose.msra.mxu0 0.0
    %363 = vmatpush.xpose.msra.mxu0 0.0
    %364 = vmatpush.xpose.msra.mxu0 0.0
    %365 = vmatpush.xpose.msra.mxu0 0.0
    %366 = vmatpush.xpose.msra.mxu0 0.0
    %367 = vmatpush.xpose.msra.mxu0 0.0
    %368 = vmatpush.xpose.msra.mxu0 0.0
    %369 = vmatpush.xpose.msra.mxu0 0.0
    %370 = vmatpush.xpose.msra.mxu0 0.0
    %371 = vmatpush.xpose.msra.mxu0 0.0
    %372 = vmatpush.xpose.msra.mxu0 0.0
    %373 = vmatpush.xpose.msra.mxu0 0.0
    %374 = vmatpush.xpose.msra.mxu0 0.0
    %375 = vmatpush.xpose.msra.mxu0 0.0
    %376 = vmatpush.xpose.msra.mxu0 0.0
    %377 = vmatpush.xpose.msra.mxu0 %v360
    %378 = vmatmul.f32.gmra.mxu0 %v357
    %v379 = vpop.f32.mrf.mxu0
    %v380 = vadd.f32 0.0, %v379
    %381 = vdwg.mxu0
    %v383 = vsel %vm142, %v188, 0
    %v386 = vsel %vm142, %v262, 0
    %388 = vmatpush.xpose.msra.mxu0 0.0
    %389 = vmatpush.xpose.msra.mxu0 0.0
    %390 = vmatpush.xpose.msra.mxu0 0.0
    %391 = vmatpush.xpose.msra.mxu0 0.0
    %392 = vmatpush.xpose.msra.mxu0 0.0
    %393 = vmatpush.xpose.msra.mxu0 0.0
    %394 = vmatpush.xpose.msra.mxu0 0.0
    %395 = vmatpush.xpose.msra.mxu0 0.0
    %396 = vmatpush.xpose.msra.mxu0 0.0
    %397 = vmatpush.xpose.msra.mxu0 0.0
    %398 = vmatpush.xpose.msra.mxu0 0.0
    %399 = vmatpush.xpose.msra.mxu0 0.0
    %400 = vmatpush.xpose.msra.mxu0 0.0
    %401 = vmatpush.xpose.msra.mxu0 0.0
    %402 = vmatpush.xpose.msra.mxu0 0.0
    %403 = vmatpush.xpose.msra.mxu0 %v386
    %404 = vmatmul.f32.gmra.mxu0 %v383
    %v405 = vpop.f32.mrf.mxu0
    %v406 = vadd.f32 0.0, %v405
    %407 = vdwg.mxu0
    %v409 = vsel %vm142, %v191, 0
    %v412 = vsel %vm142, %v265, 0
    %414 = vmatpush.xpose.msra.mxu0 0.0
    %415 = vmatpush.xpose.msra.mxu0 0.0
    %416 = vmatpush.xpose.msra.mxu0 0.0
    %417 = vmatpush.xpose.msra.mxu0 0.0
    %418 = vmatpush.xpose.msra.mxu0 0.0
    %419 = vmatpush.xpose.msra.mxu0 0.0
    %420 = vmatpush.xpose.msra.mxu0 0.0
    %421 = vmatpush.xpose.msra.mxu0 0.0
    %422 = vmatpush.xpose.msra.mxu0 0.0
    %423 = vmatpush.xpose.msra.mxu0 0.0
    %424 = vmatpush.xpose.msra.mxu0 0.0
    %425 = vmatpush.xpose.msra.mxu0 0.0
    %426 = vmatpush.xpose.msra.mxu0 0.0
    %427 = vmatpush.xpose.msra.mxu0 0.0
    %428 = vmatpush.xpose.msra.mxu0 0.0
    %429 = vmatpush.xpose.msra.mxu0 %v412
    %430 = vmatmul.f32.gmra.mxu0 %v409
    %v431 = vpop.f32.mrf.mxu0
    %v432 = vadd.f32 0.0, %v431
    %433 = vdwg.mxu0
    %v435 = vsel %vm142, %v194, 0
    %v438 = vsel %vm142, %v268, 0
    %440 = vmatpush.xpose.msra.mxu0 0.0
    %441 = vmatpush.xpose.msra.mxu0 0.0
    %442 = vmatpush.xpose.msra.mxu0 0.0
    %443 = vmatpush.xpose.msra.mxu0 0.0
    %444 = vmatpush.xpose.msra.mxu0 0.0
    %445 = vmatpush.xpose.msra.mxu0 0.0
    %446 = vmatpush.xpose.msra.mxu0 0.0
    %447 = vmatpush.xpose.msra.mxu0 0.0
    %448 = vmatpush.xpose.msra.mxu0 0.0
    %449 = vmatpush.xpose.msra.mxu0 0.0
    %450 = vmatpush.xpose.msra.mxu0 0.0
    %451 = vmatpush.xpose.msra.mxu0 0.0
    %452 = vmatpush.xpose.msra.mxu0 0.0
    %453 = vmatpush.xpose.msra.mxu0 0.0
    %454 = vmatpush.xpose.msra.mxu0 0.0
    %455 = vmatpush.xpose.msra.mxu0 %v438
    %456 = vmatmul.f32.gmra.mxu0 %v435
    %v457 = vpop.f32.mrf.mxu0
    %v458 = vadd.f32 0.0, %v457
    %459 = vdwg.mxu0
    %v461 = vsel %vm142, %v197, 0
    %v464 = vsel %vm142, %v271, 0
    %466 = vmatpush.xpose.msra.mxu0 0.0
    %467 = vmatpush.xpose.msra.mxu0 0.0
    %468 = vmatpush.xpose.msra.mxu0 0.0
    %469 = vmatpush.xpose.msra.mxu0 0.0
    %470 = vmatpush.xpose.msra.mxu0 0.0
    %471 = vmatpush.xpose.msra.mxu0 0.0
    %472 = vmatpush.xpose.msra.mxu0 0.0
    %473 = vmatpush.xpose.msra.mxu0 0.0
    %474 = vmatpush.xpose.msra.mxu0 0.0
    %475 = vmatpush.xpose.msra.mxu0 0.0
    %476 = vmatpush.xpose.msra.mxu0 0.0
    %477 = vmatpush.xpose.msra.mxu0 0.0
    %478 = vmatpush.xpose.msra.mxu0 0.0
    %479 = vmatpush.xpose.msra.mxu0 0.0
    %480 = vmatpush.xpose.msra.mxu0 0.0
    %481 = vmatpush.xpose.msra.mxu0 %v464
    %482 = vmatmul.f32.gmra.mxu0 %v461
    %v483 = vpop.f32.mrf.mxu0
    %v484 = vadd.f32 0.0, %v483
    %485 = vdwg.mxu0
    %v487 = vsel %vm142, %v200, 0
    %v490 = vsel %vm142, %v274, 0
    %492 = vmatpush.xpose.msra.mxu0 0.0
    %493 = vmatpush.xpose.msra.mxu0 0.0
    %494 = vmatpush.xpose.msra.mxu0 0.0
    %495 = vmatpush.xpose.msra.mxu0 0.0
    %496 = vmatpush.xpose.msra.mxu0 0.0
    %497 = vmatpush.xpose.msra.mxu0 0.0
    %498 = vmatpush.xpose.msra.mxu0 0.0
    %499 = vmatpush.xpose.msra.mxu0 0.0
    %500 = vmatpush.xpose.msra.mxu0 0.0
    %501 = vmatpush.xpose.msra.mxu0 0.0
    %502 = vmatpush.xpose.msra.mxu0 0.0
    %503 = vmatpush.xpose.msra.mxu0 0.0
    %504 = vmatpush.xpose.msra.mxu0 0.0
    %505 = vmatpush.xpose.msra.mxu0 0.0
    %506 = vmatpush.xpose.msra.mxu0 0.0
    %507 = vmatpush.xpose.msra.mxu0 %v490
    %508 = vmatmul.f32.gmra.mxu0 %v487
    %v509 = vpop.f32.mrf.mxu0
    %v510 = vadd.f32 0.0, %v509
    %511 = vdwg.mxu0
    %v513 = vsel %vm142, %v203, 0
    %v516 = vsel %vm142, %v277, 0
    %518 = vmatpush.xpose.msra.mxu0 0.0
    %519 = vmatpush.xpose.msra.mxu0 0.0
    %520 = vmatpush.xpose.msra.mxu0 0.0
    %521 = vmatpush.xpose.msra.mxu0 0.0
    %522 = vmatpush.xpose.msra.mxu0 0.0
    %523 = vmatpush.xpose.msra.mxu0 0.0
    %524 = vmatpush.xpose.msra.mxu0 0.0
    %525 = vmatpush.xpose.msra.mxu0 0.0
    %526 = vmatpush.xpose.msra.mxu0 0.0
    %527 = vmatpush.xpose.msra.mxu0 0.0
    %528 = vmatpush.xpose.msra.mxu0 0.0
    %529 = vmatpush.xpose.msra.mxu0 0.0
    %530 = vmatpush.xpose.msra.mxu0 0.0
    %531 = vmatpush.xpose.msra.mxu0 0.0
    %532 = vmatpush.xpose.msra.mxu0 0.0
    %533 = vmatpush.xpose.msra.mxu0 %v516
    %534 = vmatmul.f32.gmra.mxu0 %v513
    %v535 = vpop.f32.mrf.mxu0
    %v536 = vadd.f32 0.0, %v535
    %537 = vdwg.mxu0
    %v539 = vsel %vm142, %v206, 0
    %v542 = vsel %vm142, %v280, 0
    %544 = vmatpush.xpose.msra.mxu0 0.0
    %545 = vmatpush.xpose.msra.mxu0 0.0
    %546 = vmatpush.xpose.msra.mxu0 0.0
    %547 = vmatpush.xpose.msra.mxu0 0.0
    %548 = vmatpush.xpose.msra.mxu0 0.0
    %549 = vmatpush.xpose.msra.mxu0 0.0
    %550 = vmatpush.xpose.msra.mxu0 0.0
    %551 = vmatpush.xpose.msra.mxu0 0.0
    %552 = vmatpush.xpose.msra.mxu0 0.0
    %553 = vmatpush.xpose.msra.mxu0 0.0
    %554 = vmatpush.xpose.msra.mxu0 0.0
    %555 = vmatpush.xpose.msra.mxu0 0.0
    %556 = vmatpush.xpose.msra.mxu0 0.0
    %557 = vmatpush.xpose.msra.mxu0 0.0
    %558 = vmatpush.xpose.msra.mxu0 0.0
    %559 = vmatpush.xpose.msra.mxu0 %v542
    %560 = vmatmul.f32.gmra.mxu0 %v539
    %v561 = vpop.f32.mrf.mxu0
    %v562 = vadd.f32 0.0, %v561
    %563 = vdwg.mxu0
    %v564 = vsel %vm142, %v380, -inf
    %565 = vmax.xlane.f32.xlu0 %v564
    %v566 = vpop.xlane.xlu0 %565
    %v567 = vsel %vm142, %v406, -inf
    %568 = vmax.xlane.f32.xlu0 %v567
    %v569 = vpop.xlane.xlu0 %568
    %v570 = vsel %vm142, %v432, -inf
    %571 = vmax.xlane.f32.xlu0 %v570
    %v572 = vpop.xlane.xlu0 %571
    %v573 = vsel %vm142, %v458, -inf
    %574 = vmax.xlane.f32.xlu0 %v573
    %v575 = vpop.xlane.xlu0 %574
    %v576 = vsel %vm142, %v484, -inf
    %577 = vmax.xlane.f32.xlu0 %v576
    %v578 = vpop.xlane.xlu0 %577
    %v579 = vsel %vm142, %v510, -inf
    %580 = vmax.xlane.f32.xlu0 %v579
    %v581 = vpop.xlane.xlu0 %580
    %v582 = vsel %vm142, %v536, -inf
    %583 = vmax.xlane.f32.xlu0 %v582
    %v584 = vpop.xlane.xlu0 %583
    %v585 = vsel %vm142, %v562, -inf
    %586 = vmax.xlane.f32.xlu0 %v585
    %v587 = vpop.xlane.xlu0 %586
    %v588 = vsub.f32 %v380, %v566
    %v589 = vsub.f32 %v406, %v569
    %v590 = vsub.f32 %v432, %v572
    %v591 = vsub.f32 %v458, %v575
    %v592 = vsub.f32 %v484, %v578
    %v593 = vsub.f32 %v510, %v581
    %v594 = vsub.f32 %v536, %v584
    %v595 = vsub.f32 %v562, %v587
    %v596 = vmul.f32 %v588, 1.442695
    %v597 = vpow.pop %v596
    %v598 = vmul.f32 %v589, 1.442695
    %v599 = vpow.pop %v598
    %v600 = vmul.f32 %v590, 1.442695
    %v601 = vpow.pop %v600
    %v602 = vmul.f32 %v591, 1.442695
    %v603 = vpow.pop %v602
    %v604 = vmul.f32 %v592, 1.442695
    %v605 = vpow.pop %v604
    %v606 = vmul.f32 %v593, 1.442695
    %v607 = vpow.pop %v606
    %v608 = vmul.f32 %v594, 1.442695
    %v609 = vpow.pop %v608
    %v610 = vmul.f32 %v595, 1.442695
    %v611 = vpow.pop %v610
    %v612 = vsel %vm142, %v597, 0.0
    %613 = vadd.xlane.f32.xlu0 %v612
    %v614 = vpop.xlane.xlu0 %613
    %v615 = vsel %vm142, %v599, 0.0
    %616 = vadd.xlane.f32.xlu0 %v615
    %v617 = vpop.xlane.xlu0 %616
    %v618 = vsel %vm142, %v601, 0.0
    %619 = vadd.xlane.f32.xlu0 %v618
    %v620 = vpop.xlane.xlu0 %619
    %v621 = vsel %vm142, %v603, 0.0
    %622 = vadd.xlane.f32.xlu0 %v621
    %v623 = vpop.xlane.xlu0 %622
    %v624 = vsel %vm142, %v605, 0.0
    %625 = vadd.xlane.f32.xlu0 %v624
    %v626 = vpop.xlane.xlu0 %625
    %v627 = vsel %vm142, %v607, 0.0
    %628 = vadd.xlane.f32.xlu0 %v627
    %v629 = vpop.xlane.xlu0 %628
    %v630 = vsel %vm142, %v609, 0.0
    %631 = vadd.xlane.f32.xlu0 %v630
    %v632 = vpop.xlane.xlu0 %631
    %v633 = vsel %vm142, %v611, 0.0
    %634 = vadd.xlane.f32.xlu0 %v633
    %v635 = vpop.xlane.xlu0 %634
    %v636 = vrcp.pop %v614
    %v637 = vrcp.pop %v617
    %v638 = vrcp.pop %v620
    %v639 = vrcp.pop %v623
    %v640 = vrcp.pop %v626
    %v641 = vrcp.pop %v629
    %v642 = vrcp.pop %v632
    %v643 = vrcp.pop %v635
    %v644 = vmul.f32 %v597, %v636
    %v645 = vmul.f32 %v599, %v637
    %v646 = vmul.f32 %v601, %v638
    %v647 = vmul.f32 %v603, %v639
    %v648 = vmul.f32 %v605, %v640
    %v649 = vmul.f32 %v607, %v641
    %v650 = vmul.f32 %v609, %v642
    %v651 = vmul.f32 %v611, %v643
    %v653 = vsel %vm142, %v644, 0
    %655 = vmatpush.msra.mxu0 0.0
    %656 = vmatpush.msra.mxu0 0.0
    %657 = vmatpush.msra.mxu0 0.0
    %658 = vmatpush.msra.mxu0 0.0
    %659 = vmatpush.msra.mxu0 0.0
    %660 = vmatpush.msra.mxu0 0.0
    %661 = vmatpush.msra.mxu0 0.0
    %662 = vmatpush.msra.mxu0 0.0
    %663 = vmatpush.msra.mxu0 0.0
    %664 = vmatpush.msra.mxu0 0.0
    %665 = vmatpush.msra.mxu0 0.0
    %666 = vmatpush.msra.mxu0 0.0
    %667 = vmatpush.msra.mxu0 0.0
    %668 = vmatpush.msra.mxu0 0.0
    %669 = vmatpush.msra.mxu0 0.0
    %670 = vmatpush.msra.mxu0 %v333
    %671 = vmatmul.f32.gmra.mxu0 %v653
    %v672 = vpop.f32.mrf.mxu0
    %v673 = vadd.f32 0.0, %v672
    %674 = vdwg.mxu0
    %v676 = vsel %vm142, %v645, 0
    %678 = vmatpush.msra.mxu0 0.0
    %679 = vmatpush.msra.mxu0 0.0
    %680 = vmatpush.msra.mxu0 0.0
    %681 = vmatpush.msra.mxu0 0.0
    %682 = vmatpush.msra.mxu0 0.0
    %683 = vmatpush.msra.mxu0 0.0
    %684 = vmatpush.msra.mxu0 0.0
    %685 = vmatpush.msra.mxu0 0.0
    %686 = vmatpush.msra.mxu0 0.0
    %687 = vmatpush.msra.mxu0 0.0
    %688 = vmatpush.msra.mxu0 0.0
    %689 = vmatpush.msra.mxu0 0.0
    %690 = vmatpush.msra.mxu0 0.0
    %691 = vmatpush.msra.mxu0 0.0
    %692 = vmatpush.msra.mxu0 0.0
    %693 = vmatpush.msra.mxu0 %v336
    %694 = vmatmul.f32.gmra.mxu0 %v676
    %v695 = vpop.f32.mrf.mxu0
    %v696 = vadd.f32 0.0, %v695
    %697 = vdwg.mxu0
    %v699 = vsel %vm142, %v646, 0
    %701 = vmatpush.msra.mxu0 0.0
    %702 = vmatpush.msra.mxu0 0.0
    %703 = vmatpush.msra.mxu0 0.0
    %704 = vmatpush.msra.mxu0 0.0
    %705 = vmatpush.msra.mxu0 0.0
    %706 = vmatpush.msra.mxu0 0.0
    %707 = vmatpush.msra.mxu0 0.0
    %708 = vmatpush.msra.mxu0 0.0
    %709 = vmatpush.msra.mxu0 0.0
    %710 = vmatpush.msra.mxu0 0.0
    %711 = vmatpush.msra.mxu0 0.0
    %712 = vmatpush.msra.mxu0 0.0
    %713 = vmatpush.msra.mxu0 0.0
    %714 = vmatpush.msra.mxu0 0.0
    %715 = vmatpush.msra.mxu0 0.0
    %716 = vmatpush.msra.mxu0 %v339
    %717 = vmatmul.f32.gmra.mxu0 %v699
    %v718 = vpop.f32.mrf.mxu0
    %v719 = vadd.f32 0.0, %v718
    %720 = vdwg.mxu0
    %v722 = vsel %vm142, %v647, 0
    %724 = vmatpush.msra.mxu0 0.0
    %725 = vmatpush.msra.mxu0 0.0
    %726 = vmatpush.msra.mxu0 0.0
    %727 = vmatpush.msra.mxu0 0.0
    %728 = vmatpush.msra.mxu0 0.0
    %729 = vmatpush.msra.mxu0 0.0
    %730 = vmatpush.msra.mxu0 0.0
    %731 = vmatpush.msra.mxu0 0.0
    %732 = vmatpush.msra.mxu0 0.0
    %733 = vmatpush.msra.mxu0 0.0
    %734 = vmatpush.msra.mxu0 0.0
    %735 = vmatpush.msra.mxu0 0.0
    %736 = vmatpush.msra.mxu0 0.0
    %737 = vmatpush.msra.mxu0 0.0
    %738 = vmatpush.msra.mxu0 0.0
    %739 = vmatpush.msra.mxu0 %v342
    %740 = vmatmul.f32.gmra.mxu0 %v722
    %v741 = vpop.f32.mrf.mxu0
    %v742 = vadd.f32 0.0, %v741
    %743 = vdwg.mxu0
    %v745 = vsel %vm142, %v648, 0
    %747 = vmatpush.msra.mxu0 0.0
    %748 = vmatpush.msra.mxu0 0.0
    %749 = vmatpush.msra.mxu0 0.0
    %750 = vmatpush.msra.mxu0 0.0
    %751 = vmatpush.msra.mxu0 0.0
    %752 = vmatpush.msra.mxu0 0.0
    %753 = vmatpush.msra.mxu0 0.0
    %754 = vmatpush.msra.mxu0 0.0
    %755 = vmatpush.msra.mxu0 0.0
    %756 = vmatpush.msra.mxu0 0.0
    %757 = vmatpush.msra.mxu0 0.0
    %758 = vmatpush.msra.mxu0 0.0
    %759 = vmatpush.msra.mxu0 0.0
    %760 = vmatpush.msra.mxu0 0.0
    %761 = vmatpush.msra.mxu0 0.0
    %762 = vmatpush.msra.mxu0 %v345
    %763 = vmatmul.f32.gmra.mxu0 %v745
    %v764 = vpop.f32.mrf.mxu0
    %v765 = vadd.f32 0.0, %v764
    %766 = vdwg.mxu0
    %v768 = vsel %vm142, %v649, 0
    %770 = vmatpush.msra.mxu0 0.0
    %771 = vmatpush.msra.mxu0 0.0
    %772 = vmatpush.msra.mxu0 0.0
    %773 = vmatpush.msra.mxu0 0.0
    %774 = vmatpush.msra.mxu0 0.0
    %775 = vmatpush.msra.mxu0 0.0
    %776 = vmatpush.msra.mxu0 0.0
    %777 = vmatpush.msra.mxu0 0.0
    %778 = vmatpush.msra.mxu0 0.0
    %779 = vmatpush.msra.mxu0 0.0
    %780 = vmatpush.msra.mxu0 0.0
    %781 = vmatpush.msra.mxu0 0.0
    %782 = vmatpush.msra.mxu0 0.0
    %783 = vmatpush.msra.mxu0 0.0
    %784 = vmatpush.msra.mxu0 0.0
    %785 = vmatpush.msra.mxu0 %v348
    %786 = vmatmul.f32.gmra.mxu0 %v768
    %v787 = vpop.f32.mrf.mxu0
    %v788 = vadd.f32 0.0, %v787
    %789 = vdwg.mxu0
    %v791 = vsel %vm142, %v650, 0
    %793 = vmatpush.msra.mxu0 0.0
    %794 = vmatpush.msra.mxu0 0.0
    %795 = vmatpush.msra.mxu0 0.0
    %796 = vmatpush.msra.mxu0 0.0
    %797 = vmatpush.msra.mxu0 0.0
    %798 = vmatpush.msra.mxu0 0.0
    %799 = vmatpush.msra.mxu0 0.0
    %800 = vmatpush.msra.mxu0 0.0
    %801 = vmatpush.msra.mxu0 0.0
    %802 = vmatpush.msra.mxu0 0.0
    %803 = vmatpush.msra.mxu0 0.0
    %804 = vmatpush.msra.mxu0 0.0
    %805 = vmatpush.msra.mxu0 0.0
    %806 = vmatpush.msra.mxu0 0.0
    %807 = vmatpush.msra.mxu0 0.0
    %808 = vmatpush.msra.mxu0 %v351
    %809 = vmatmul.f32.gmra.mxu0 %v791
    %v810 = vpop.f32.mrf.mxu0
    %v811 = vadd.f32 0.0, %v810
    %812 = vdwg.mxu0
    %v814 = vsel %vm142, %v651, 0
    %816 = vmatpush.msra.mxu0 0.0
    %817 = vmatpush.msra.mxu0 0.0
    %818 = vmatpush.msra.mxu0 0.0
    %819 = vmatpush.msra.mxu0 0.0
    %820 = vmatpush.msra.mxu0 0.0
    %821 = vmatpush.msra.mxu0 0.0
    %822 = vmatpush.msra.mxu0 0.0
    %823 = vmatpush.msra.mxu0 0.0
    %824 = vmatpush.msra.mxu0 0.0
    %825 = vmatpush.msra.mxu0 0.0
    %826 = vmatpush.msra.mxu0 0.0
    %827 = vmatpush.msra.mxu0 0.0
    %828 = vmatpush.msra.mxu0 0.0
    %829 = vmatpush.msra.mxu0 0.0
    %830 = vmatpush.msra.mxu0 0.0
    %831 = vmatpush.msra.mxu0 %v354
    %832 = vmatmul.f32.gmra.mxu0 %v814
    %v833 = vpop.f32.mrf.mxu0
    %v834 = vadd.f32 0.0, %v833
    %835 = vdwg.mxu0
    %v836 = vld [vmem:[#allocation13] sm:$0xff]
    %v837 = vld [vmem:[#allocation13 + $0x8] sm:$0xff]
    %v838 = vld [vmem:[#allocation13 + $0x10] sm:$0xff]
    %v839 = vld [vmem:[#allocation13 + $0x18] sm:$0xff]
    %v841 = vsel %vm142, %v673, 0
    %843 = vmatpush.msra.mxu0 0.0
    %844 = vmatpush.msra.mxu0 0.0
    %845 = vmatpush.msra.mxu0 0.0
    %846 = vmatpush.msra.mxu0 0.0
    %847 = vmatpush.msra.mxu0 0.0
    %848 = vmatpush.msra.mxu0 0.0
    %849 = vmatpush.msra.mxu0 0.0
    %850 = vmatpush.msra.mxu0 0.0
    %851 = vmatpush.msra.mxu0 0.0
    %852 = vmatpush.msra.mxu0 0.0
    %853 = vmatpush.msra.mxu0 0.0
    %854 = vmatpush.msra.mxu0 0.0
    %855 = vmatpush.msra.mxu0 0.0
    %856 = vmatpush.msra.mxu0 0.0
    %857 = vmatpush.msra.mxu0 0.0
    %858 = vmatpush.msra.mxu0 %v836
    %859 = vmatmul.f32.gmra.mxu0 %v841
    %v860 = vpop.f32.mrf.mxu0
    %v861 = vadd.f32 0.0, %v860
    %862 = vdwg.mxu0
    %v864 = vsel %vm142, %v696, 0
    %866 = vmatpush.msra.mxu0 0.0
    %867 = vmatpush.msra.mxu0 0.0
    %868 = vmatpush.msra.mxu0 0.0
    %869 = vmatpush.msra.mxu0 0.0
    %870 = vmatpush.msra.mxu0 0.0
    %871 = vmatpush.msra.mxu0 0.0
    %872 = vmatpush.msra.mxu0 0.0
    %873 = vmatpush.msra.mxu0 0.0
    %874 = vmatpush.msra.mxu0 0.0
    %875 = vmatpush.msra.mxu0 0.0
    %876 = vmatpush.msra.mxu0 0.0
    %877 = vmatpush.msra.mxu0 0.0
    %878 = vmatpush.msra.mxu0 0.0
    %879 = vmatpush.msra.mxu0 0.0
    %880 = vmatpush.msra.mxu0 0.0
    %881 = vmatpush.msra.mxu0 %v837
    %882 = vmatmul.f32.gmra.mxu0 %v864
    %v883 = vpop.f32.mrf.mxu0
    %v884 = vadd.f32 0.0, %v883
    %885 = vdwg.mxu0
    %v887 = vsel %vm142, %v719, 0
    %889 = vmatpush.msra.mxu0 0.0
    %890 = vmatpush.msra.mxu0 0.0
    %891 = vmatpush.msra.mxu0 0.0
    %892 = vmatpush.msra.mxu0 0.0
    %893 = vmatpush.msra.mxu0 0.0
    %894 = vmatpush.msra.mxu0 0.0
    %895 = vmatpush.msra.mxu0 0.0
    %896 = vmatpush.msra.mxu0 0.0
    %897 = vmatpush.msra.mxu0 0.0
    %898 = vmatpush.msra.mxu0 0.0
    %899 = vmatpush.msra.mxu0 0.0
    %900 = vmatpush.msra.mxu0 0.0
    %901 = vmatpush.msra.mxu0 0.0
    %902 = vmatpush.msra.mxu0 0.0
    %903 = vmatpush.msra.mxu0 0.0
    %904 = vmatpush.msra.mxu0 %v838
    %905 = vmatmul.f32.gmra.mxu0 %v887
    %v906 = vpop.f32.mrf.mxu0
    %v907 = vadd.f32 0.0, %v906
    %908 = vdwg.mxu0
    %v910 = vsel %vm142, %v742, 0
    %912 = vmatpush.msra.mxu0 0.0
    %913 = vmatpush.msra.mxu0 0.0
    %914 = vmatpush.msra.mxu0 0.0
    %915 = vmatpush.msra.mxu0 0.0
    %916 = vmatpush.msra.mxu0 0.0
    %917 = vmatpush.msra.mxu0 0.0
    %918 = vmatpush.msra.mxu0 0.0
    %919 = vmatpush.msra.mxu0 0.0
    %920 = vmatpush.msra.mxu0 0.0
    %921 = vmatpush.msra.mxu0 0.0
    %922 = vmatpush.msra.mxu0 0.0
    %923 = vmatpush.msra.mxu0 0.0
    %924 = vmatpush.msra.mxu0 0.0
    %925 = vmatpush.msra.mxu0 0.0
    %926 = vmatpush.msra.mxu0 0.0
    %927 = vmatpush.msra.mxu0 %v839
    %928 = vmatmul.f32.gmra.mxu0 %v910
    %v929 = vpop.f32.mrf.mxu0
    %v930 = vadd.f32 0.0, %v929
    %931 = vdwg.mxu0
    %v933 = vsel %vm142, %v765, 0
    %935 = vmatpush.msra.mxu0 0.0
    %936 = vmatpush.msra.mxu0 0.0
    %937 = vmatpush.msra.mxu0 0.0
    %938 = vmatpush.msra.mxu0 0.0
    %939 = vmatpush.msra.mxu0 0.0
    %940 = vmatpush.msra.mxu0 0.0
    %941 = vmatpush.msra.mxu0 0.0
    %942 = vmatpush.msra.mxu0 0.0
    %943 = vmatpush.msra.mxu0 0.0
    %944 = vmatpush.msra.mxu0 0.0
    %945 = vmatpush.msra.mxu0 0.0
    %946 = vmatpush.msra.mxu0 0.0
    %947 = vmatpush.msra.mxu0 0.0
    %948 = vmatpush.msra.mxu0 0.0
    %949 = vmatpush.msra.mxu0 0.0
    %950 = vmatpush.msra.mxu0 %v836
    %951 = vmatmul.f32.gmra.mxu0 %v933
    %v952 = vpop.f32.mrf.mxu0
    %v953 = vadd.f32 0.0, %v952
    %954 = vdwg.mxu0
    %v956 = vsel %vm142, %v788, 0
    %958 = vmatpush.msra.mxu0 0.0
    %959 = vmatpush.msra.mxu0 0.0
    %960 = vmatpush.msra.mxu0 0.0
    %961 = vmatpush.msra.mxu0 0.0
    %962 = vmatpush.msra.mxu0 0.0
    %963 = vmatpush.msra.mxu0 0.0
    %964 = vmatpush.msra.mxu0 0.0
    %965 = vmatpush.msra.mxu0 0.0
    %966 = vmatpush.msra.mxu0 0.0
    %967 = vmatpush.msra.mxu0 0.0
    %968 = vmatpush.msra.mxu0 0.0
    %969 = vmatpush.msra.mxu0 0.0
    %970 = vmatpush.msra.mxu0 0.0
    %971 = vmatpush.msra.mxu0 0.0
    %972 = vmatpush.msra.mxu0 0.0
    %973 = vmatpush.msra.mxu0 %v837
    %974 = vmatmul.f32.gmra.mxu0 %v956
    %v975 = vpop.f32.mrf.mxu0
    %v976 = vadd.f32 0.0, %v975
    %977 = vdwg.mxu0
    %v979 = vsel %vm142, %v811, 0
    %981 = vmatpush.msra.mxu0 0.0
    %982 = vmatpush.msra.mxu0 0.0
    %983 = vmatpush.msra.mxu0 0.0
    %984 = vmatpush.msra.mxu0 0.0
    %985 = vmatpush.msra.mxu0 0.0
    %986 = vmatpush.msra.mxu0 0.0
    %987 = vmatpush.msra.mxu0 0.0
    %988 = vmatpush.msra.mxu0 0.0
    %989 = vmatpush.msra.mxu0 0.0
    %990 = vmatpush.msra.mxu0 0.0
    %991 = vmatpush.msra.mxu0 0.0
    %992 = vmatpush.msra.mxu0 0.0
    %993 = vmatpush.msra.mxu0 0.0
    %994 = vmatpush.msra.mxu0 0.0
    %995 = vmatpush.msra.mxu0 0.0
    %996 = vmatpush.msra.mxu0 %v838
    %997 = vmatmul.f32.gmra.mxu0 %v979
    %v998 = vpop.f32.mrf.mxu0
    %v999 = vadd.f32 0.0, %v998
    %1000 = vdwg.mxu0
    %v1002 = vsel %vm142, %v834, 0
    %1004 = vmatpush.msra.mxu0 0.0
    %1005 = vmatpush.msra.mxu0 0.0
    %1006 = vmatpush.msra.mxu0 0.0
    %1007 = vmatpush.msra.mxu0 0.0
    %1008 = vmatpush.msra.mxu0 0.0
    %1009 = vmatpush.msra.mxu0 0.0
    %1010 = vmatpush.msra.mxu0 0.0
    %1011 = vmatpush.msra.mxu0 0.0
    %1012 = vmatpush.msra.mxu0 0.0
    %1013 = vmatpush.msra.mxu0 0.0
    %1014 = vmatpush.msra.mxu0 0.0
    %1015 = vmatpush.msra.mxu0 0.0
    %1016 = vmatpush.msra.mxu0 0.0
    %1017 = vmatpush.msra.mxu0 0.0
    %1018 = vmatpush.msra.mxu0 0.0
    %1019 = vmatpush.msra.mxu0 %v839
    %1020 = vmatmul.f32.gmra.mxu0 %v1002
    %v1021 = vpop.f32.mrf.mxu0
    %v1022 = vadd.f32 0.0, %v1021
    %1023 = vdwg.mxu0
    %vm1024 = vcmask 261120
    %v1025 = vsel %vm1024, %v861, 0.0
    %v1026 = vsel %vm1024, %v884, 0.0
    %v1027 = vadd.f32 %v1025, %v1026
    %v1028 = vsel %vm1024, %v907, 0.0
    %v1029 = vadd.f32 %v1027, %v1028
    %v1030 = vsel %vm1024, %v930, 0.0
    %v1031 = vadd.f32 %v1029, %v1030
    %v1032 = vsel %vm1024, %v953, 0.0
    %v1033 = vsel %vm1024, %v976, 0.0
    %v1034 = vadd.f32 %v1032, %v1033
    %v1035 = vsel %vm1024, %v999, 0.0
    %v1036 = vadd.f32 %v1034, %v1035
    %v1037 = vsel %vm1024, %v1022, 0.0
    %v1038 = vadd.f32 %v1036, %v1037
    %v1039 = vld [vmem:[%s7] sm:$0x1]
    %v1041 = vperm.slane %v1039, 0
    %v1043 = vadd.f32 %v1031, %v1041
    %v1044 = vadd.f32 %v1038, %v1041
    %1045 = vst.msk [vmem:[#allocation14] sm:$0xff] %vm1024, %v1043
    %1046 = vst.msk [vmem:[#allocation14 + $0x8] sm:$0xff] %vm1024, %v1044
    // Predicated region
    $region62: #{tpu_custom_call.1} parent=1 // pred_check
      _
    $region63: #{tpu_custom_call.1} parent=1 // pred_check_branch
      %1048 = sbr.rel (0) target = $region65
    $region64: #{tpu_custom_call.1} parent=1 // pred_region
      %1050 = vsyncadd [#allocation4], 0
      %s1051 = sshll.u32 [#allocation14], 4
      %s1052 = int_to_ptr.vmem [resolvable:$true] %s1051
      %s1053 = sshll.u32 %s8, 4
      %s1054 = int_to_ptr.hbm [resolvable:$true] %s1053
      %1059 = dma.vmem_to_hbm [thread:$0]  %s1052, 256, %s1054, [#allocation4], 128, 128, 8
    $region65: #{tpu_custom_call.1} parent=1 // pred_fallthru
      _
    // Predicated region
    $region66: #{tpu_custom_call.1} parent=1 // pred_check
      _
    $region67: #{tpu_custom_call.1} parent=1 // pred_check_branch
      %1061 = sbr.rel (0) target = $region69
    $region68: #{tpu_custom_call.1} parent=1 // pred_region
      %1063 = dma.done [#allocation4], 256
    $region69: #{tpu_custom_call.1} parent=1 // pred_fallthru
      _
    %1064 = vsyncpa [#allocation3], 1
    %1065 = vsyncpa [#allocation6], 1
    %1066 = vsyncpa [#allocation9], 1
    %1067 = vsyncpa [#allocation12], 1
    %1068 = vsyncpa [#allocation4], 1

</llo_original>
